<compile_context>
chip_gen: v7x
topology: tpu7x:2x2x1
jax: 0.10.0
libtpu: 0.0.40
codegen_flags: <defaults>
</compile_context>

<pallas_src>
import jax
import jax.numpy as jnp
from jax.experimental import pallas as pl
from jax.experimental.pallas import tpu as pltpu


def _round_up(x, m):
    return (x + m - 1) // m * m


def _transition_kernel(*refs):
    """out = (sum_i x_i @ w_i) + bias, accumulated in f32 on the MXU."""
    *xw_refs, b_ref, o_ref = refs
    n = len(xw_refs) // 2
    x_refs, w_refs = xw_refs[:n], xw_refs[n:]

    acc = jnp.dot(x_refs[0][...], w_refs[0][...], preferred_element_type=jnp.float32)
    for x_ref, w_ref in zip(x_refs[1:], w_refs[1:]):
        acc = acc + jnp.dot(x_ref[...], w_ref[...], preferred_element_type=jnp.float32)
    o_ref[...] = (acc + b_ref[...]).astype(o_ref.dtype)


def transition_step(state, control, context, w_s, w_u, w_c, bias, *,
                    compute_dtype=jnp.bfloat16, target_tile_b=1024,
                    force_pallas=False):
    """Linear transition step: state @ W_s + control @ W_u (+ context @ W_c) + b."""
    B, n_state = state.shape
    out_dtype = state.dtype

    xs = [state, control]
    ws = [w_s, w_u]
    if context is not None and w_c is not None and context.shape[-1] > 0:
        xs.append(context)
        ws.append(w_c)
    ks = [x.shape[-1] for x in xs]
    k_total = sum(ks)

    bias2d = jnp.reshape(bias, (1, n_state)).astype(jnp.float32)

    # --- small-shape fast path: plain XLA beats pad/launch/slice overhead ---
    if not force_pallas and B * k_total < 64 * 1024:
        out = xs[0] @ ws[0]
        for x, w in zip(xs[1:], ws[1:]):
            out = out + x @ w
        return (out + bias2d).astype(out_dtype)

    # --- Pallas path ---
    in_itemsize = jnp.dtype(compute_dtype).itemsize
    out_itemsize = jnp.dtype(out_dtype).itemsize
    sublane = 8 * max(1, 4 // in_itemsize)      # 8 for f32, 16 for bf16
    n_pad = _round_up(n_state, 128)             # lane-dense (unmasked) output stores

    # Adaptive batch tile: ~target_tile_b rows per grid step.
    n_tiles = max(1, pl.cdiv(B, target_tile_b))
    tile_b = _round_up(pl.cdiv(B, n_tiles), sublane)

    # VMEM-budget guard (double-buffered activation/output tiles + weights + bias).
    def _step_bytes(tb):
        return (2 * tb * (k_total * in_itemsize + n_pad * out_itemsize)
                + 2 * (k_total * n_pad * in_itemsize + n_pad * 4))

    vmem_budget = 24 * 1024 * 1024              # headroom under v7x 32 MiB scoped default
    while tile_b > sublane and _step_bytes(tile_b) > vmem_budget:
        tile_b = max(sublane, _round_up(tile_b // 2, sublane))

    b_pad = _round_up(B, tile_b)
    grid = (b_pad // tile_b,)

    # bf16 (default) for DMA/MXU inputs; pad only the ragged batch tail (if any).
    xs = [x.astype(compute_dtype) for x in xs]
    if b_pad != B:
        xs = [jnp.pad(x, ((0, b_pad - B), (0, 0))) for x in xs]
    ws = [jnp.pad(w.astype(compute_dtype), ((0, 0), (0, n_pad - n_state))) for w in ws]
    bias_p = jnp.pad(bias2d, ((0, 0), (0, n_pad - n_state)))

    in_specs = (
        [pl.BlockSpec((tile_b, k), lambda i: (i, 0)) for k in ks]        # activations
        + [pl.BlockSpec((k, n_pad), lambda i: (0, 0)) for k in ks]       # weights (constant)
        + [pl.BlockSpec((1, n_pad), lambda i: (0, 0))]                   # bias (constant)
    )

    cost = pl.CostEstimate(
        flops=2 * b_pad * k_total * n_pad,
        transcendentals=0,
        bytes_accessed=int(b_pad * (k_total * in_itemsize + n_pad * out_itemsize)
                           + k_total * n_pad * in_itemsize + n_pad * 4),
    )

    out = pl.pallas_call(
        _transition_kernel,
        out_shape=jax.ShapeDtypeStruct((b_pad, n_pad), out_dtype),
        grid=grid,
        in_specs=in_specs,
        out_specs=pl.BlockSpec((tile_b, n_pad), lambda i: (i, 0)),
        compiler_params=pltpu.CompilerParams(
            dimension_semantics=("parallel",),   # megacore split on v7x; no-op on v5e/v6e
        ),
        cost_estimate=cost,
    )(*xs, *ws, bias_p)

    if b_pad != B or n_pad != n_state:
        out = out[:B, :n_state]
    return out


def transition_loss():
    # Matches Transition.loss() in the PyTorch module.
    return 0.0


def _reference(state, control, context, w_s, w_u, w_c, bias):
    out = state @ w_s + control @ w_u + jnp.reshape(bias, (1, -1))
    if context is not None and w_c is not None:
        out = out + context @ w_c
    return out


if __name__ == "__main__":
    key = jax.random.PRNGKey(0)
    B, n_state, n_control, n_context = 8, 32, 16, 8

    k = jax.random.split(key, 7)
    state = jax.random.normal(k[0], (B, n_state), dtype=jnp.float32)
    control = jax.random.normal(k[1], (B, n_control), dtype=jnp.float32)
    context = jax.random.normal(k[2], (B, n_context), dtype=jnp.float32)

    # Deterministic parameter init (synthetic, no checkpoint).
    w_s = 0.1 * jax.random.normal(k[3], (n_state, n_state), dtype=jnp.float32)
    w_u = 0.1 * jax.random.normal(k[4], (n_control, n_state), dtype=jnp.float32)
    w_c = 0.1 * jax.random.normal(k[5], (n_context, n_state), dtype=jnp.float32)
    bias = 0.1 * jax.random.normal(k[6], (n_state,), dtype=jnp.float32)

    ref = _reference(state, control, context, w_s, w_u, w_c, bias)

    # Pallas path, bf16 DMA/MXU inputs + f32 accumulation (forced at this small shape).
    out = transition_step(state, control, context, w_s, w_u, w_c, bias,
                          force_pallas=True)
    out = jax.block_until_ready(out)
    assert out.shape == (B, n_state)
    assert jnp.allclose(out, ref, atol=5e-2, rtol=5e-2)

    # Pallas path, f32 end-to-end (tight tolerance).
    out_f32 = transition_step(state, control, context, w_s, w_u, w_c, bias,
                              force_pallas=True, compute_dtype=jnp.float32)
    out_f32 = jax.block_until_ready(out_f32)
    assert jnp.allclose(out_f32, ref, atol=1e-5, rtol=1e-5)

    # context=None path of the PyTorch signature.
    out_nc = transition_step(state, control, None, w_s, w_u, None, bias,
                             force_pallas=True)
    out_nc = jax.block_until_ready(out_nc)
    ref_nc = _reference(state, control, None, w_s, w_u, None, bias)
    assert out_nc.shape == (B, n_state)
    assert jnp.allclose(out_nc, ref_nc, atol=5e-2, rtol=5e-2)

    # Small-shape auto fast path (plain XLA).
    out_auto = jax.block_until_ready(
        transition_step(state, control, context, w_s, w_u, w_c, bias))
    assert jnp.allclose(out_auto, ref, atol=1e-5, rtol=1e-5)

    assert transition_loss() == 0.0

    print("KERNEL_OK")
</pallas_src>

<mosaic_0001>
module attributes {stable_mosaic.version = 11 : i64} {
  func.func @_transition_kernel(%arg0: i32, %arg1: memref<16x32xbf16, #tpu.memory_space<vmem>>, %arg2: memref<16x16xbf16, #tpu.memory_space<vmem>>, %arg3: memref<16x8xbf16, #tpu.memory_space<vmem>>, %arg4: memref<32x128xbf16, #tpu.memory_space<vmem>>, %arg5: memref<16x128xbf16, #tpu.memory_space<vmem>>, %arg6: memref<8x128xbf16, #tpu.memory_space<vmem>>, %arg7: memref<1x128xf32, #tpu.memory_space<vmem>>, %arg8: memref<16x128xf32, #tpu.memory_space<vmem>>) attributes {dimension_semantics = [#tpu.dimension_semantics<parallel>], iteration_bounds = array<i64: 1>, scalar_prefetch = 0 : i64, scratch_operands = 0 : i64, tpu.core_type = #tpu.core_type<tc>, window_params = [{transform_indices = @transform_0, window_bounds = array<i64: 16, 32>}, {transform_indices = @transform_1, window_bounds = array<i64: 16, 16>}, {transform_indices = @transform_2, window_bounds = array<i64: 16, 8>}, {pipeline_mode = #tpu.pipeline_mode<synchronous>, transform_indices = @transform_3, window_bounds = array<i64: 32, 128>}, {pipeline_mode = #tpu.pipeline_mode<synchronous>, transform_indices = @transform_4, window_bounds = array<i64: 16, 128>}, {pipeline_mode = #tpu.pipeline_mode<synchronous>, transform_indices = @transform_5, window_bounds = array<i64: 8, 128>}, {pipeline_mode = #tpu.pipeline_mode<synchronous>, transform_indices = @transform_6, window_bounds = array<i64: 1, 128>}, {transform_indices = @transform_7, window_bounds = array<i64: 16, 128>}]} {
    %c0 = arith.constant 0 : index
    %c0_0 = arith.constant 0 : index
    %0 = vector.load %arg1[%c0, %c0_0] : memref<16x32xbf16, #tpu.memory_space<vmem>>, vector<16x32xbf16>
    %c0_1 = arith.constant 0 : index
    %c0_2 = arith.constant 0 : index
    %1 = vector.load %arg4[%c0_1, %c0_2] : memref<32x128xbf16, #tpu.memory_space<vmem>>, vector<32x128xbf16>
    %cst = arith.constant dense<0.000000e+00> : vector<16x128xf32>
    %2 = tpu.matmul %0, %1, %cst {dimension_numbers = #tpu.dot_dimension_numbers<[1], [0], [0], [1], [0, 0, 1, 1], [], []>} : vector<16x32xbf16>, vector<32x128xbf16>, vector<16x128xf32> -> vector<16x128xf32>
    %c0_3 = arith.constant 0 : index
    %c0_4 = arith.constant 0 : index
    %3 = vector.load %arg2[%c0_3, %c0_4] : memref<16x16xbf16, #tpu.memory_space<vmem>>, vector<16x16xbf16>
    %c0_5 = arith.constant 0 : index
    %c0_6 = arith.constant 0 : index
    %4 = vector.load %arg5[%c0_5, %c0_6] : memref<16x128xbf16, #tpu.memory_space<vmem>>, vector<16x128xbf16>
    %cst_7 = arith.constant dense<0.000000e+00> : vector<16x128xf32>
    %5 = tpu.matmul %3, %4, %cst_7 {dimension_numbers = #tpu.dot_dimension_numbers<[1], [0], [0], [1], [0, 0, 1, 1], [], []>} : vector<16x16xbf16>, vector<16x128xbf16>, vector<16x128xf32> -> vector<16x128xf32>
    %6 = arith.addf %2, %5 : vector<16x128xf32>
    %c0_8 = arith.constant 0 : index
    %c0_9 = arith.constant 0 : index
    %7 = vector.load %arg3[%c0_8, %c0_9] : memref<16x8xbf16, #tpu.memory_space<vmem>>, vector<16x8xbf16>
    %c0_10 = arith.constant 0 : index
    %c0_11 = arith.constant 0 : index
    %8 = vector.load %arg6[%c0_10, %c0_11] : memref<8x128xbf16, #tpu.memory_space<vmem>>, vector<8x128xbf16>
    %cst_12 = arith.constant dense<0.000000e+00> : vector<16x128xf32>
    %9 = tpu.matmul %7, %8, %cst_12 {dimension_numbers = #tpu.dot_dimension_numbers<[1], [0], [0], [1], [0, 0, 1, 1], [], []>} : vector<16x8xbf16>, vector<8x128xbf16>, vector<16x128xf32> -> vector<16x128xf32>
    %10 = arith.addf %6, %9 : vector<16x128xf32>
    %c0_13 = arith.constant 0 : index
    %c0_14 = arith.constant 0 : index
    %11 = vector.load %arg7[%c0_13, %c0_14] : memref<1x128xf32, #tpu.memory_space<vmem>>, vector<1x128xf32>
    %12 = vector.broadcast %11 : vector<1x128xf32> to vector<16x128xf32>
    %13 = arith.addf %10, %12 : vector<16x128xf32>
    %c0_15 = arith.constant 0 : index
    %c0_16 = arith.constant 0 : index
    %14 = vector.load %arg8[%c0_15, %c0_16] : memref<16x128xf32, #tpu.memory_space<vmem>>, vector<16x128xf32>
    tpu.vector_store %arg8[%c0_15, %c0_16], %13 {strides = array<i32>} : memref<16x128xf32, #tpu.memory_space<vmem>>, vector<16x128xf32>,
    return
  }
  func.func @transform_0(%arg0: i32) -> (i32, i32) {
    %c0_i32 = arith.constant 0 : i32
    %c0_i32_0 = arith.constant 0 : i32
    return %arg0, %c0_i32 : i32, i32
  }
  func.func @transform_1(%arg0: i32) -> (i32, i32) {
    %c0_i32 = arith.constant 0 : i32
    %c0_i32_0 = arith.constant 0 : i32
    return %arg0, %c0_i32 : i32, i32
  }
  func.func @transform_2(%arg0: i32) -> (i32, i32) {
    %c0_i32 = arith.constant 0 : i32
    %c0_i32_0 = arith.constant 0 : i32
    return %arg0, %c0_i32 : i32, i32
  }
  func.func @transform_3(%arg0: i32) -> (i32, i32) {
    %c0_i32 = arith.constant 0 : i32
    %c0_i32_0 = arith.constant 0 : i32
    %c0_i32_1 = arith.constant 0 : i32
    return %c0_i32, %c0_i32_0 : i32, i32
  }
  func.func @transform_4(%arg0: i32) -> (i32, i32) {
    %c0_i32 = arith.constant 0 : i32
    %c0_i32_0 = arith.constant 0 : i32
    %c0_i32_1 = arith.constant 0 : i32
    return %c0_i32, %c0_i32_0 : i32, i32
  }
  func.func @transform_5(%arg0: i32) -> (i32, i32) {
    %c0_i32 = arith.constant 0 : i32
    %c0_i32_0 = arith.constant 0 : i32
    %c0_i32_1 = arith.constant 0 : i32
    return %c0_i32, %c0_i32_0 : i32, i32
  }
  func.func @transform_6(%arg0: i32) -> (i32, i32) {
    %c0_i32 = arith.constant 0 : i32
    %c0_i32_0 = arith.constant 0 : i32
    %c0_i32_1 = arith.constant 0 : i32
    return %c0_i32, %c0_i32_0 : i32, i32
  }
  func.func @transform_7(%arg0: i32) -> (i32, i32) {
    %c0_i32 = arith.constant 0 : i32
    %c0_i32_0 = arith.constant 0 : i32
    return %arg0, %c0_i32 : i32, i32
  }
}

</mosaic_0001>

<llo_original>
// kernel: tpu_custom_call.1
$region0: #{tpu_custom_call.1}
  #allocation0 [shape = 'u32[]', space=smem, size = 0x4, offset = 0x4, fixed_abs, tag = 'smem constant byte address 0x4 - core index']
  #allocation1 [shape = 'u32[144,128]{1,0:T(1,128)}', space=vmem, size = 0x12000, scoped, tag = 'internal scratch']
  %s0 = inlined_call_operand.hbm [shape: bf16[16,32], index: 0, kind: input, shape index: {}]
  %s1 = inlined_call_operand.hbm [shape: bf16[16,16], index: 1, kind: input, shape index: {}]
  %s2 = inlined_call_operand.vmem [shape: bf16[16,8], index: 2, kind: input, shape index: {}]
  %s3 = inlined_call_operand.vmem [shape: bf16[32,128], index: 3, kind: input, shape index: {}]
  %s4 = inlined_call_operand.vmem [shape: bf16[16,128], index: 4, kind: input, shape index: {}]
  %s5 = inlined_call_operand.vmem [shape: bf16[8,128], index: 5, kind: input, shape index: {}]
  %s6 = inlined_call_operand.vmem [shape: f32[1,128], index: 6, kind: input, shape index: {}]
  %s7 = inlined_call_operand.hbm [shape: f32[16,128], index: 7, kind: output, shape index: {}]
  %s8 = sld [smem:[#allocation0]]
  $region46: #{tpu_custom_call.1} parent=0
    _
  %s10 = ssub.s32 1, %s8
  %s11 = scalar_select 0, %s10, %s8
  $region1: #{tpu_custom_call.1} parent=0
    #allocation2 [shape = 'u8[4096]{0}', space=vmem, size = 0x1000, scoped, tag = 'input window, operand 0, single buffered']
    #allocation3 [shape = 's32[1]{0}', space=sflag, size = 0x4, scoped, tag = 'scoped memory for tpu_custom_call.1']
    #allocation4 [shape = 's32[1]{0}', space=sflag, size = 0x4, scoped, tag = 'scoped memory for tpu_custom_call.1']
    #allocation5 [shape = 'u8[4096]{0}', space=vmem, size = 0x1000, scoped, tag = 'input window, operand 1, single buffered']
    #allocation6 [shape = 's32[1]{0}', space=sflag, size = 0x4, scoped, tag = 'scoped memory for tpu_custom_call.1']
    #allocation7 [shape = 'u8[8192]{0}', space=vmem, size = 0x2000, scoped, tag = 'output window, operand 0, single buffered']
    %12 = vsyncpa [#allocation3], 0
    %13 = vsyncpa [#allocation6], 0
    %14 = vsyncpa [#allocation4], 0
    // Predicated region
    $region2: #{tpu_custom_call.1} parent=1 // pred_check
      _
    $region3: #{tpu_custom_call.1} parent=1 // pred_check_branch
      %16 = sbr.rel (0) target = $region5
    $region4: #{tpu_custom_call.1} parent=1 // pred_region
      %s18 = ssub.s32 128, 128
      %19 = vsyncadd [#allocation3], %s18
      %s20 = sshll.u32 [#allocation2], 4
      %s21 = int_to_ptr.vmem [resolvable:$true] %s20
      %26 = dma.hbm_to_vmem [thread:$0]  %s0, 128, %s21, [#allocation3], 64, 64, 4
    $region5: #{tpu_custom_call.1} parent=1 // pred_fallthru
      _
    // Predicated region
    $region6: #{tpu_custom_call.1} parent=1 // pred_check
      _
    $region7: #{tpu_custom_call.1} parent=1 // pred_check_branch
      %28 = sbr.rel (0) target = $region9
    $region8: #{tpu_custom_call.1} parent=1 // pred_region
      %s30 = ssub.s32 128, 128
      %31 = vsyncadd [#allocation6], %s30
      %s32 = sshll.u32 [#allocation5], 4
      %s33 = int_to_ptr.vmem [resolvable:$true] %s32
      %38 = dma.hbm_to_vmem [thread:$0]  %s1, 128, %s33, [#allocation6], 64, 64, 4
    $region9: #{tpu_custom_call.1} parent=1 // pred_fallthru
      _
    // Predicated region
    $region10: #{tpu_custom_call.1} parent=1 // pred_check
      _
    $region11: #{tpu_custom_call.1} parent=1 // pred_check_branch
      %40 = sbr.rel (0) target = $region13
    $region12: #{tpu_custom_call.1} parent=1 // pred_region
      _
    $region13: #{tpu_custom_call.1} parent=1 // pred_fallthru
      _
    // Predicated region
    $region14: #{tpu_custom_call.1} parent=1 // pred_check
      _
    $region15: #{tpu_custom_call.1} parent=1 // pred_check_branch
      %42 = sbr.rel (0) target = $region17
    $region16: #{tpu_custom_call.1} parent=1 // pred_region
      _
    $region17: #{tpu_custom_call.1} parent=1 // pred_fallthru
      _
    // Predicated region
    $region18: #{tpu_custom_call.1} parent=1 // pred_check
      _
    $region19: #{tpu_custom_call.1} parent=1 // pred_check_branch
      %44 = sbr.rel (0) target = $region21
    $region20: #{tpu_custom_call.1} parent=1 // pred_region
      _
    $region21: #{tpu_custom_call.1} parent=1 // pred_fallthru
      _
    // Predicated region
    $region22: #{tpu_custom_call.1} parent=1 // pred_check
      _
    $region23: #{tpu_custom_call.1} parent=1 // pred_check_branch
      %46 = sbr.rel (0) target = $region25
    $region24: #{tpu_custom_call.1} parent=1 // pred_region
      _
    $region25: #{tpu_custom_call.1} parent=1 // pred_fallthru
      _
    // Predicated region
    $region26: #{tpu_custom_call.1} parent=1 // pred_check
      _
    $region27: #{tpu_custom_call.1} parent=1 // pred_check_branch
      %48 = sbr.rel (0) target = $region29
    $region28: #{tpu_custom_call.1} parent=1 // pred_region
      _
    $region29: #{tpu_custom_call.1} parent=1 // pred_fallthru
      _
    // Predicated region
    $region30: #{tpu_custom_call.1} parent=1 // pred_check
      _
    $region31: #{tpu_custom_call.1} parent=1 // pred_check_branch
      %50 = sbr.rel (0) target = $region33
    $region32: #{tpu_custom_call.1} parent=1 // pred_region
      %51 = dma.done [#allocation3], 128
    $region33: #{tpu_custom_call.1} parent=1 // pred_fallthru
      _
    // Predicated region
    $region34: #{tpu_custom_call.1} parent=1 // pred_check
      _
    $region35: #{tpu_custom_call.1} parent=1 // pred_check_branch
      %53 = sbr.rel (0) target = $region37
    $region36: #{tpu_custom_call.1} parent=1 // pred_region
      %54 = dma.done [#allocation6], 128
    $region37: #{tpu_custom_call.1} parent=1 // pred_fallthru
      _
    %v56 = vld [vmem:[#allocation2] sm:$0xf]
    %v57 = vld [vmem:[#allocation2 + $0x4] sm:$0xf]
    %v58 = vld [vmem:[%s3] sm:$0xf]
    %v59 = vld [vmem:[%s3 + $0x4] sm:$0xf]
    %v60 = vld [vmem:[%s3 + $0x8] sm:$0xf]
    %v61 = vld [vmem:[%s3 + $0xc] sm:$0xf]
    %v62 = vld [vmem:[#allocation5] sm:$0xf]
    %v63 = vld [vmem:[#allocation5 + $0x4] sm:$0xf]
    %v64 = vld [vmem:[%s4] sm:$0xf]
    %v65 = vld [vmem:[%s4 + $0x4] sm:$0xf]
    %v68 = vunpack.c.l.b16 %v62
    %v69 = vunpack.c.l.b16 %v63
    %v70 = vpack.c.b16 %v69, %v68
    %v73 = vunpack.c.l.b16 %v64
    %v74 = vunpack.c.l.b16 %v65
    %v75 = vpack.c.b16 %v74, %v73
    %vm77 = vcmask 130048
    %v79 = vsel %vm77, %v70, 0
    %81 = vmatprep.subr.bf16.mxu0 0
    %82 = vmatpush1.bf16.msra.mxu0 %v75
    %83 = vmatprep.subr.bf16.mxu0 0
    %84 = vmatpush1.bf16.msra.mxu0 0
    %85 = vmatprep.subr.bf16.mxu0 0
    %86 = vmatpush1.bf16.msra.mxu0 0
    %87 = vmatprep.subr.bf16.mxu0 0
    %88 = vmatpush1.bf16.msra.mxu0 0
    %89 = vmatprep.subr.bf16.mxu0 0
    %90 = vmatpush1.bf16.msra.mxu0 0
    %91 = vmatprep.subr.bf16.mxu0 0
    %92 = vmatpush1.bf16.msra.mxu0 0
    %93 = vmatprep.subr.bf16.mxu0 0
    %94 = vmatpush1.bf16.msra.mxu0 0
    %95 = vmatprep.subr.bf16.mxu0 0
    %96 = vmatpush1.bf16.msra.mxu0 0
    %97 = vmatprep.subr.bf16.mxu0 0
    %98 = vmatpush1.bf16.msra.mxu0 0
    %99 = vmatprep.subr.bf16.mxu0 0
    %100 = vmatpush1.bf16.msra.mxu0 0
    %101 = vmatprep.subr.bf16.mxu0 0
    %102 = vmatpush1.bf16.msra.mxu0 0
    %103 = vmatprep.subr.bf16.mxu0 0
    %104 = vmatpush1.bf16.msra.mxu0 0
    %105 = vmatprep.subr.bf16.mxu0 0
    %106 = vmatpush1.bf16.msra.mxu0 0
    %107 = vmatprep.subr.bf16.mxu0 0
    %108 = vmatpush1.bf16.msra.mxu0 0
    %109 = vmatprep.subr.bf16.mxu0 0
    %110 = vmatpush1.bf16.msra.mxu0 0
    %111 = vmatprep.subr.bf16.mxu0 0
    %112 = vmatpush1.bf16.msra.mxu0 0
    %113 = vmatprep.mubr.bf16.mxu0 0
    %114 = vmatmul.mubr.bf16.gmra.mrb[0].mxu0 %v79
    %v115 = vpop.f32.mrb[0].mxu0
    %v116 = vadd.f32 0.0, %v115
    %v117 = vpop.f32.mrb[0].mxu0
    %v118 = vpop.f32.mrb[0].mxu0
    %v119 = vadd.f32 0.0, %v118
    %v120 = vpop.f32.mrb[0].mxu0
    %121 = vdwg.mxu0
    %v124 = vunpack.c.l.b16 %v56
    %v125 = vunpack.c.l.b16 %v57
    %v126 = vpack.c.b16 %v125, %v124
    %v131 = vunpack.c.l.b16 %v58
    %v132 = vunpack.c.l.b16 %v59
    %v133 = vunpack.c.l.b16 %v60
    %v134 = vunpack.c.l.b16 %v61
    %v135 = vpack.c.b16 %v132, %v131
    %v136 = vpack.c.b16 %v134, %v133
    %vm139 = vcmask 261120
    %v141 = vsel %vm139, %v126, 0
    %143 = vmatprep.subr.bf16.mxu0 0
    %144 = vmatpush1.bf16.msra.mxu0 %v135
    %145 = vmatprep.subr.bf16.mxu0 0
    %146 = vmatpush1.bf16.msra.mxu0 %v136
    %147 = vmatprep.subr.bf16.mxu0 0
    %148 = vmatpush1.bf16.msra.mxu0 0
    %149 = vmatprep.subr.bf16.mxu0 0
    %150 = vmatpush1.bf16.msra.mxu0 0
    %151 = vmatprep.subr.bf16.mxu0 0
    %152 = vmatpush1.bf16.msra.mxu0 0
    %153 = vmatprep.subr.bf16.mxu0 0
    %154 = vmatpush1.bf16.msra.mxu0 0
    %155 = vmatprep.subr.bf16.mxu0 0
    %156 = vmatpush1.bf16.msra.mxu0 0
    %157 = vmatprep.subr.bf16.mxu0 0
    %158 = vmatpush1.bf16.msra.mxu0 0
    %159 = vmatprep.subr.bf16.mxu0 0
    %160 = vmatpush1.bf16.msra.mxu0 0
    %161 = vmatprep.subr.bf16.mxu0 0
    %162 = vmatpush1.bf16.msra.mxu0 0
    %163 = vmatprep.subr.bf16.mxu0 0
    %164 = vmatpush1.bf16.msra.mxu0 0
    %165 = vmatprep.subr.bf16.mxu0 0
    %166 = vmatpush1.bf16.msra.mxu0 0
    %167 = vmatprep.subr.bf16.mxu0 0
    %168 = vmatpush1.bf16.msra.mxu0 0
    %169 = vmatprep.subr.bf16.mxu0 0
    %170 = vmatpush1.bf16.msra.mxu0 0
    %171 = vmatprep.subr.bf16.mxu0 0
    %172 = vmatpush1.bf16.msra.mxu0 0
    %173 = vmatprep.subr.bf16.mxu0 0
    %174 = vmatpush1.bf16.msra.mxu0 0
    %175 = vmatprep.mubr.bf16.mxu0 0
    %176 = vmatmul.mubr.bf16.gmra.mrb[0].mxu0 %v141
    %v177 = vpop.f32.mrb[0].mxu0
    %v178 = vadd.f32 %v116, %v177
    %v179 = vpop.f32.mrb[0].mxu0
    %v180 = vpop.f32.mrb[0].mxu0
    %v181 = vadd.f32 %v119, %v180
    %v182 = vpop.f32.mrb[0].mxu0
    %183 = vdwg.mxu0
    %v184 = vld [vmem:[%s2] sm:$0xf]
    %v185 = vld [vmem:[%s2 + $0x4] sm:$0xf]
    %v186 = vld [vmem:[%s5] sm:$0xf]
    %v189 = vunpack.c.l.b16 %v184
    %v190 = vunpack.c.l.b16 %v185
    %v191 = vpack.c.b16 %v190, %v189
    %vm192 = vcmask 64512
    %v194 = vsel %vm192, %v191, 0
    %vm196 = vcmask 1043456
    %v198 = vsel %vm196, %v186, 0
    %200 = vmatprep.subr.bf16.mxu0 0
    %201 = vmatpush1.bf16.msra.mxu0 %v198
    %202 = vmatprep.subr.bf16.mxu0 0
    %203 = vmatpush1.bf16.msra.mxu0 0
    %204 = vmatprep.subr.bf16.mxu0 0
    %205 = vmatpush1.bf16.msra.mxu0 0
    %206 = vmatprep.subr.bf16.mxu0 0
    %207 = vmatpush1.bf16.msra.mxu0 0
    %208 = vmatprep.subr.bf16.mxu0 0
    %209 = vmatpush1.bf16.msra.mxu0 0
    %210 = vmatprep.subr.bf16.mxu0 0
    %211 = vmatpush1.bf16.msra.mxu0 0
    %212 = vmatprep.subr.bf16.mxu0 0
    %213 = vmatpush1.bf16.msra.mxu0 0
    %214 = vmatprep.subr.bf16.mxu0 0
    %215 = vmatpush1.bf16.msra.mxu0 0
    %216 = vmatprep.subr.bf16.mxu0 0
    %217 = vmatpush1.bf16.msra.mxu0 0
    %218 = vmatprep.subr.bf16.mxu0 0
    %219 = vmatpush1.bf16.msra.mxu0 0
    %220 = vmatprep.subr.bf16.mxu0 0
    %221 = vmatpush1.bf16.msra.mxu0 0
    %222 = vmatprep.subr.bf16.mxu0 0
    %223 = vmatpush1.bf16.msra.mxu0 0
    %224 = vmatprep.subr.bf16.mxu0 0
    %225 = vmatpush1.bf16.msra.mxu0 0
    %226 = vmatprep.subr.bf16.mxu0 0
    %227 = vmatpush1.bf16.msra.mxu0 0
    %228 = vmatprep.subr.bf16.mxu0 0
    %229 = vmatpush1.bf16.msra.mxu0 0
    %230 = vmatprep.subr.bf16.mxu0 0
    %231 = vmatpush1.bf16.msra.mxu0 0
    %232 = vmatprep.mubr.bf16.mxu0 0
    %233 = vmatmul.mubr.bf16.gmra.mrb[0].mxu0 %v194
    %v234 = vpop.f32.mrb[0].mxu0
    %v235 = vadd.f32 0.0, %v234
    %v236 = vpop.f32.mrb[0].mxu0
    %v237 = vpop.f32.mrb[0].mxu0
    %v238 = vadd.f32 0.0, %v237
    %v239 = vpop.f32.mrb[0].mxu0
    %240 = vdwg.mxu0
    %v241 = vadd.f32 %v178, %v235
    %v242 = vadd.f32 %v181, %v238
    %v243 = vld [vmem:[%s6] sm:$0x1]
    %v245 = vlaneseq
    %v246 = vshrl.u32 %v245, 7
    %v247 = vsub.s32 0, %v246
    %v248 = vrot.slane %v243, %v247
    %v250 = vadd.f32 %v241, %v248
    %v251 = vadd.f32 %v242, %v248
    %252 = vst [vmem:[#allocation7] sm:$0xff] %v250
    %253 = vst [vmem:[#allocation7 + $0x8] sm:$0xff] %v251
    // Predicated region
    $region38: #{tpu_custom_call.1} parent=1 // pred_check
      _
    $region39: #{tpu_custom_call.1} parent=1 // pred_check_branch
      %255 = sbr.rel (0) target = $region41
    $region40: #{tpu_custom_call.1} parent=1 // pred_region
      %s257 = ssub.s32 256, 256
      %258 = vsyncadd [#allocation4], %s257
      %s259 = sshll.u32 [#allocation7], 4
      %s260 = int_to_ptr.vmem [resolvable:$true] %s259
      %265 = dma.vmem_to_hbm [thread:$0]  %s260, 256, %s7, [#allocation4], 128, 128, 8
    $region41: #{tpu_custom_call.1} parent=1 // pred_fallthru
      _
    // Predicated region
    $region42: #{tpu_custom_call.1} parent=1 // pred_check
      _
    $region43: #{tpu_custom_call.1} parent=1 // pred_check_branch
      %267 = sbr.rel (0) target = $region45
    $region44: #{tpu_custom_call.1} parent=1 // pred_region
      %268 = dma.done [#allocation4], 256
    $region45: #{tpu_custom_call.1} parent=1 // pred_fallthru
      _
    %269 = vsyncpa [#allocation3], 1
    %270 = vsyncpa [#allocation6], 1
    %271 = vsyncpa [#allocation4], 1

</llo_original>
